<compile_context>
chip_gen: v7x
topology: tpu7x:2x2x1
jax: 0.10.0
libtpu: 0.0.40
codegen_flags: <defaults>
</compile_context>

<pallas_src>
import math
from functools import partial

import jax
import jax.numpy as jnp
from jax import lax
from jax.experimental import pallas as pl
from jax.experimental.pallas import tpu as pltpu

_F32_TINY = float(jnp.finfo(jnp.float32).tiny)


def _contrastive_kernel(temps_ref,          # SMEM (L,)      = exp(temperatures)
                        a_ref,              # VMEM (1, TB, D) audio rows
                        tt_ref,             # VMEM (1, D, B)  text, pre-transposed (MXU RHS)
                        tm_ref,             # VMEM (1, TB, D) matching text rows (diagonal)
                        rowacc_ref,         # VMEM (1, 1, 1)  sum_i (0.5*log den_i - diag_i)
                        ccol_ref,           # VMEM (1, 1, B)  per-column running max
                        rcol_ref,           # VMEM (1, 1, B)  per-column shifted sum-of-exp
                        diag_ref,           # VMEM (1, TB, 1) diag(sims) for this row block
                        *, decoupled):
    l = pl.program_id(0)
    rb = pl.program_id(1)

    # Per-layer accumulator init.  The accumulators are output blocks whose
    # index_map is constant along rb, so they stay VMEM-resident across the
    # whole (arbitrary) rb axis and are written back once per layer.
    @pl.when(rb == 0)
    def _init():
        rowacc_ref[...] = jnp.zeros_like(rowacc_ref)
        ccol_ref[...] = jnp.full_like(ccol_ref, -jnp.inf)
        rcol_ref[...] = jnp.zeros_like(rcol_ref)

    temp = temps_ref[l]                                     # exp(temperature_l), scalar

    a = a_ref[0]                                            # (TB, D), native dtype
    # Fold the temperature into the small (TB, D) operand.
    a_scaled = (a.astype(jnp.float32) * temp).astype(a.dtype)

    # s[i, j] = exp(temp) * <a_i, t_j>; plain (TB, D) x (D, B) MXU matmul with
    # f32 accumulation (text already transposed in the wrapper).
    s = jnp.dot(a_scaled, tt_ref[0], preferred_element_type=jnp.float32)   # (TB, B)

    # Numerator / diagonal straight from the matching text rows: no eye mask,
    # no exp/log round trip; valid for both paths (already temperature-scaled).
    diag = jnp.sum(a_scaled.astype(jnp.float32) * tm_ref[0].astype(jnp.float32),
                   axis=1, keepdims=True)                                  # (TB, 1)
    diag_ref[0] = diag

    # ---- row-side terms (each row is complete inside one block) ----
    m_row = jnp.max(s, axis=1, keepdims=True)                              # (TB, 1)
    e = jnp.exp(s - m_row)                                                 # the ONE (TB, B) exp
    row_sum = jnp.sum(e, axis=1, keepdims=True)                            # (TB, 1)
    if decoupled:
        # Drop the diagonal from the row denominator; tiny floor guards the
        # ulp mismatch between the VPU diag and the MXU diagonal inside s.
        row_sum = jnp.maximum(row_sum - jnp.exp(diag - m_row), _F32_TINY)
    log_den_i = m_row + jnp.log(row_sum)                                   # (TB, 1)
    rowacc_ref[...] = rowacc_ref[...] + jnp.sum(0.5 * log_den_i - diag)

    # ---- online per-column sum-of-exp: MXU matvec + per-column running max ----
    m_blk = jnp.max(m_row, keepdims=True)                                  # (1, 1) block max
    w = jnp.exp(m_row - m_blk)                                             # (TB, 1), all <= 1
    # u[j] = sum_i exp(s[i, j] - m_blk): contraction on the MXU (2*TB*B flops)
    # instead of a (TB, B) VPU multiply + sublane add-reduce.
    u = lax.dot_general(w, e, (((0,), (0,)), ((), ())),
                        preferred_element_type=jnp.float32)                # (1, B)
    m_col = jnp.max(s, axis=0, keepdims=True)                              # (1, B) per-column block max
    c_old = ccol_ref[0]                                                    # (1, B)
    c_new = jnp.maximum(c_old, m_col)
    # exp(log u + (m_blk - c_new)) == sum_i exp(s[i, j] - c_new[j]) without
    # ever materializing exp(m_blk - c_new) (which overflows for columns far
    # below the block max); log(0) = -inf -> exp(-inf) = 0 keeps cold columns
    # finite instead of producing inf/nan.
    contrib = jnp.exp(jnp.log(u) + (m_blk - c_new))                        # (1, B)
    rcol_ref[0] = rcol_ref[0] * jnp.exp(c_old - c_new) + contrib
    ccol_ref[0] = c_new


def _vmem_budget_bytes():
    """Generation-aware VMEM budget (v5e/v6e: 128 MiB, v7x: 64 MiB), with
    ~25% headroom left for compiler temporaries."""
    cap = 64 * 1024 * 1024            # conservative default (v7x per-core VMEM)
    try:
        info = pltpu.get_tpu_info()
        cap = int(getattr(info, "vmem_capacity_bytes", cap))
    except Exception:
        pass
    return (cap * 3) // 4


def _pick_block_rows(batch, dim, itemsize, vmem_bytes, cap=512):
    """Largest TB that is a multiple of 8 dividing batch (or the full batch),
    <= cap, and whose working set (double-buffered audio/t_match blocks,
    resident (D, B) text, f32 (TB, B) temporaries) fits the VMEM budget."""
    if batch % 8 != 0:
        return batch                                   # single full-batch block
    resident = 2 * dim * batch * itemsize + 8 * batch * 4

    def fits(tb):
        work = 4 * tb * dim * itemsize + 3 * tb * batch * 4 + 4 * tb * 4
        return resident + work <= vmem_bytes

    hi = min(cap, batch)
    hi -= hi % 8
    for tb in range(hi, 7, -8):
        if batch % tb == 0 and fits(tb):
            return tb
    return 8


def softmax_contrastive_loss(audio_latents, text_latents, temperatures, *,
                             decoupled_contrastive_learning=False,
                             block_rows=None):
    """JAX/Pallas equivalent of SoftmaxContrastiveLearning.forward (single device)."""
    if audio_latents.ndim == 2:
        audio_latents = audio_latents[None]
    if text_latents.ndim == 2:
        text_latents = text_latents[None]

    layers, batch, dim = audio_latents.shape
    if text_latents.shape != (layers, batch, dim):
        raise ValueError(f"text_latents shape {text_latents.shape} != "
                         f"audio_latents shape {(layers, batch, dim)}")

    temps = jnp.asarray(temperatures, jnp.float32)
    if temps.size != layers:
        raise ValueError(f"temperatures must have {layers} entries, got {temps.shape}")
    temps_exp = jnp.exp(temps.reshape(layers))          # exp(temperature) per layer -> SMEM

    itemsize = jnp.dtype(audio_latents.dtype).itemsize
    vmem_bytes = _vmem_budget_bytes()
    tb = block_rows if block_rows is not None else _pick_block_rows(
        batch, dim, itemsize, vmem_bytes)
    if tb != batch and (tb % 8 != 0 or batch % tb != 0):
        raise ValueError(f"block_rows={tb} must equal batch or be a multiple of 8 "
                         f"dividing batch={batch}")
    num_rb = batch // tb if tb != batch else 1

    # Text transposed once per layer (XLA op); (D, B) is the natural MXU RHS.
    text_t = jnp.swapaxes(text_latents, 1, 2)           # (L, D, B)

    kernel = partial(_contrastive_kernel, decoupled=decoupled_contrastive_learning)

    rowacc, c_col, r_col, diag = pl.pallas_call(
        kernel,
        out_shape=(
            jax.ShapeDtypeStruct((layers, 1, 1), jnp.float32),       # row_acc
            jax.ShapeDtypeStruct((layers, 1, batch), jnp.float32),   # c_col (col running max)
            jax.ShapeDtypeStruct((layers, 1, batch), jnp.float32),   # r_col (col shifted sum-exp)
            jax.ShapeDtypeStruct((layers, batch, 1), jnp.float32),   # diag(sims)
        ),
        grid_spec=pltpu.PrefetchScalarGridSpec(
            num_scalar_prefetch=1,
            grid=(layers, num_rb),
            in_specs=[
                pl.BlockSpec((1, tb, dim), lambda l, rb, temps: (l, rb, 0)),      # audio rows
                pl.BlockSpec((1, dim, batch), lambda l, rb, temps: (l, 0, 0)),    # text^T (resident/layer)
                pl.BlockSpec((1, tb, dim), lambda l, rb, temps: (l, rb, 0)),      # matching text rows
            ],
            out_specs=[
                pl.BlockSpec((1, 1, 1), lambda l, rb, temps: (l, 0, 0)),
                pl.BlockSpec((1, 1, batch), lambda l, rb, temps: (l, 0, 0)),
                pl.BlockSpec((1, 1, batch), lambda l, rb, temps: (l, 0, 0)),
                pl.BlockSpec((1, tb, 1), lambda l, rb, temps: (l, rb, 0)),
            ],
        ),
        compiler_params=pltpu.CompilerParams(
            dimension_semantics=("parallel", "arbitrary"),
            vmem_limit_bytes=vmem_bytes,
        ),
    )(temps_exp, audio_latents, text_t, text_latents)

    # Per-layer finalize (tiny (L, B) glue): column log-sum-exp + mean + sum.
    c = c_col[:, 0, :]                                   # (L, B)
    r = r_col[:, 0, :]                                   # (L, B)
    if decoupled_contrastive_learning:
        r = jnp.maximum(r - jnp.exp(diag[:, :, 0] - c), _F32_TINY)
    log_den_j = c + jnp.log(r)                           # (L, B)
    per_layer = (rowacc[:, 0, 0] + 0.5 * jnp.sum(log_den_j, axis=-1)) / batch
    return jnp.sum(per_layer)


def _reference_loss(audio, text, temps, decoupled=False):
    """Pure-JAX reference mirroring the PyTorch module."""
    temps = jnp.asarray(temps, jnp.float32).reshape(-1, 1, 1)
    sims = jnp.einsum("lid,ljd->lij",
                      audio.astype(jnp.float32), text.astype(jnp.float32),
                      precision=jax.lax.Precision.HIGHEST) * jnp.exp(temps)
    e = jnp.exp(sims)
    numerator = jnp.diagonal(e, axis1=-2, axis2=-1)            # (L, B)
    if decoupled:
        eye = jnp.eye(e.shape[-1], dtype=bool)
        e = jnp.where(eye[None], 0.0, e)
    di = jnp.sum(e, axis=-1)                                   # (L, B)
    dj = jnp.sum(e, axis=-2)                                   # (L, B)
    loss = -jnp.log(numerator) + 0.5 * (jnp.log(di) + jnp.log(dj))
    return jnp.sum(jnp.mean(loss, axis=-1))


if __name__ == "__main__":
    INIT_TEMP = 10.0
    key = jax.random.PRNGKey(0)
    k1, k2, k3, k4 = jax.random.split(key, 4)

    # Case 1: small layer, single row block per layer.
    L, B, D = 2, 8, 32
    audio = 0.1 * jax.random.normal(k1, (L, B, D), jnp.float32)
    text = 0.1 * jax.random.normal(k2, (L, B, D), jnp.float32)
    temps = jnp.full((L, 1, 1), math.log(INIT_TEMP), jnp.float32)

    out = jax.block_until_ready(softmax_contrastive_loss(audio, text, temps))
    ref = _reference_loss(audio, text, temps)
    assert jnp.allclose(out, ref, rtol=1e-4, atol=1e-4), (out, ref)

    out_d = jax.block_until_ready(
        softmax_contrastive_loss(audio, text, temps,
                                 decoupled_contrastive_learning=True))
    ref_d = _reference_loss(audio, text, temps, decoupled=True)
    assert jnp.allclose(out_d, ref_d, rtol=1e-4, atol=1e-4), (out_d, ref_d)

    # Case 2: multiple row blocks per layer (exercises the online column LSE path).
    L2, B2, D2 = 2, 32, 32
    audio2 = 0.1 * jax.random.normal(k3, (L2, B2, D2), jnp.float32)
    text2 = 0.1 * jax.random.normal(k4, (L2, B2, D2), jnp.float32)
    temps2 = jnp.full((L2, 1, 1), math.log(INIT_TEMP), jnp.float32)

    out2 = jax.block_until_ready(
        softmax_contrastive_loss(audio2, text2, temps2, block_rows=16))
    ref2 = _reference_loss(audio2, text2, temps2)
    assert jnp.allclose(out2, ref2, rtol=1e-4, atol=1e-4), (out2, ref2)

    out2_d = jax.block_until_ready(
        softmax_contrastive_loss(audio2, text2, temps2, block_rows=16,
                                 decoupled_contrastive_learning=True))
    ref2_d = _reference_loss(audio2, text2, temps2, decoupled=True)
    assert jnp.allclose(out2_d, ref2_d, rtol=1e-4, atol=1e-4), (out2_d, ref2_d)

    print("KERNEL_OK")
</pallas_src>

<mosaic_0001>
module attributes {stable_mosaic.version = 11 : i64} {
  func.func @_contrastive_kernel(%arg0: i32, %arg1: i32, %arg2: memref<2xf32, #tpu.memory_space<smem>>, %arg3: memref<1x8x32xf32, #tpu.memory_space<vmem>>, %arg4: memref<1x32x8xf32, #tpu.memory_space<vmem>>, %arg5: memref<1x8x32xf32, #tpu.memory_space<vmem>>, %arg6: memref<1x1x1xf32, #tpu.memory_space<vmem>>, %arg7: memref<1x1x8xf32, #tpu.memory_space<vmem>>, %arg8: memref<1x1x8xf32, #tpu.memory_space<vmem>>, %arg9: memref<1x8x1xf32, #tpu.memory_space<vmem>>) attributes {dimension_semantics = [#tpu.dimension_semantics<parallel>, #tpu.dimension_semantics<arbitrary>], iteration_bounds = array<i64: 2, 1>, scalar_prefetch = 1 : i64, scratch_operands = 0 : i64, tpu.core_type = #tpu.core_type<tc>, window_params = [{transform_indices = @transform_0, window_bounds = array<i64: 1, 8, 32>}, {transform_indices = @transform_1, window_bounds = array<i64: 1, 32, 8>}, {transform_indices = @transform_2, window_bounds = array<i64: 1, 8, 32>}, {transform_indices = @transform_3, window_bounds = array<i64: 1, 1, 1>}, {transform_indices = @transform_4, window_bounds = array<i64: 1, 1, 8>}, {transform_indices = @transform_5, window_bounds = array<i64: 1, 1, 8>}, {transform_indices = @transform_6, window_bounds = array<i64: 1, 8, 1>}]} {
    %c0_i32 = arith.constant 0 : i32
    %0 = arith.cmpi eq, %arg1, %c0_i32 : i32
    %1 = arith.extui %0 : i1 to i32
    %c0_i32_0 = arith.constant 0 : i32
    %2 = arith.cmpi ne, %1, %c0_i32_0 : i32
    scf.if %2 {
      %cst_38 = arith.constant 0.000000e+00 : f32
      %71 = vector.broadcast %cst_38 : f32 to vector<1x1x1xf32>
      %c0_39 = arith.constant 0 : index
      %c0_40 = arith.constant 0 : index
      %c0_41 = arith.constant 0 : index
      %72 = vector.load %arg6[%c0_39, %c0_40, %c0_41] : memref<1x1x1xf32, #tpu.memory_space<vmem>>, vector<1x1x1xf32>
      tpu.vector_store %arg6[%c0_39, %c0_40, %c0_41], %71 {strides = array<i32>} : memref<1x1x1xf32, #tpu.memory_space<vmem>>, vector<1x1x1xf32>,
      %cst_42 = arith.constant 0xFF800000 : f32
      %73 = vector.broadcast %cst_42 : f32 to vector<1x1x8xf32>
      %c0_43 = arith.constant 0 : index
      %c0_44 = arith.constant 0 : index
      %c0_45 = arith.constant 0 : index
      %74 = vector.load %arg7[%c0_43, %c0_44, %c0_45] : memref<1x1x8xf32, #tpu.memory_space<vmem>>, vector<1x1x8xf32>
      tpu.vector_store %arg7[%c0_43, %c0_44, %c0_45], %73 {strides = array<i32>} : memref<1x1x8xf32, #tpu.memory_space<vmem>>, vector<1x1x8xf32>,
      %cst_46 = arith.constant 0.000000e+00 : f32
      %75 = vector.broadcast %cst_46 : f32 to vector<1x1x8xf32>
      %c0_47 = arith.constant 0 : index
      %c0_48 = arith.constant 0 : index
      %c0_49 = arith.constant 0 : index
      %76 = vector.load %arg8[%c0_47, %c0_48, %c0_49] : memref<1x1x8xf32, #tpu.memory_space<vmem>>, vector<1x1x8xf32>
      tpu.vector_store %arg8[%c0_47, %c0_48, %c0_49], %75 {strides = array<i32>} : memref<1x1x8xf32, #tpu.memory_space<vmem>>, vector<1x1x8xf32>,
    } else {
    }
    %3 = arith.index_cast %arg0 : i32 to index
    %4 = memref.load %arg2[%3] : memref<2xf32, #tpu.memory_space<smem>>
    %c0 = arith.constant 0 : index
    %c0_1 = arith.constant 0 : index
    %c0_2 = arith.constant 0 : index
    %5 = vector.load %arg3[%c0, %c0_1, %c0_2] : memref<1x8x32xf32, #tpu.memory_space<vmem>>, vector<1x8x32xf32>
    %6 = vector.shape_cast %5 : vector<1x8x32xf32> to vector<8x32xf32>
    %7 = vector.broadcast %4 : f32 to vector<8x32xf32>
    %8 = arith.mulf %6, %7 : vector<8x32xf32>
    %c0_3 = arith.constant 0 : index
    %c0_4 = arith.constant 0 : index
    %c0_5 = arith.constant 0 : index
    %9 = vector.load %arg4[%c0_3, %c0_4, %c0_5] : memref<1x32x8xf32, #tpu.memory_space<vmem>>, vector<1x32x8xf32>
    %10 = vector.shape_cast %9 : vector<1x32x8xf32> to vector<32x8xf32>
    %cst = arith.constant dense<0.000000e+00> : vector<8x8xf32>
    %11 = tpu.matmul %8, %10, %cst {dimension_numbers = #tpu.dot_dimension_numbers<[1], [0], [0], [1], [0, 0, 1, 1], [], []>} : vector<8x32xf32>, vector<32x8xf32>, vector<8x8xf32> -> vector<8x8xf32>
    %c0_6 = arith.constant 0 : index
    %c0_7 = arith.constant 0 : index
    %c0_8 = arith.constant 0 : index
    %12 = vector.load %arg5[%c0_6, %c0_7, %c0_8] : memref<1x8x32xf32, #tpu.memory_space<vmem>>, vector<1x8x32xf32>
    %13 = vector.shape_cast %12 : vector<1x8x32xf32> to vector<8x32xf32>
    %14 = arith.mulf %8, %13 : vector<8x32xf32>
    %cst_9 = arith.constant dense<0.000000e+00> : vector<8xf32>
    %15 = vector.multi_reduction <add>, %14, %cst_9 [1] : vector<8x32xf32> to vector<8xf32>
    %16 = vector.shape_cast %15 : vector<8xf32> to vector<8x1xf32>
    %c0_10 = arith.constant 0 : index
    %c0_11 = arith.constant 0 : index
    %c0_12 = arith.constant 0 : index
    %17 = vector.load %arg9[%c0_10, %c0_11, %c0_12] : memref<1x8x1xf32, #tpu.memory_space<vmem>>, vector<1x8x1xf32>
    %18 = vector.shape_cast %17 : vector<1x8x1xf32> to vector<8x1xf32>
    %19 = vector.shape_cast %16 : vector<8x1xf32> to vector<1x8x1xf32>
    tpu.vector_store %arg9[%c0_10, %c0_11, %c0_12], %19 {strides = array<i32>} : memref<1x8x1xf32, #tpu.memory_space<vmem>>, vector<1x8x1xf32>,
    %cst_13 = arith.constant dense<0xFF800000> : vector<8xf32>
    %20 = vector.multi_reduction <maximumf>, %11, %cst_13 [1] : vector<8x8xf32> to vector<8xf32>
    %21 = vector.shape_cast %20 : vector<8xf32> to vector<8x1xf32>
    %22 = vector.broadcast %21 : vector<8x1xf32> to vector<8x8xf32>
    %23 = arith.subf %11, %22 : vector<8x8xf32>
    %24 = math.exp %23 : vector<8x8xf32>
    %cst_14 = arith.constant dense<0.000000e+00> : vector<8xf32>
    %25 = vector.multi_reduction <add>, %24, %cst_14 [1] : vector<8x8xf32> to vector<8xf32>
    %26 = vector.shape_cast %25 : vector<8xf32> to vector<8x1xf32>
    %27 = math.log %26 : vector<8x1xf32>
    %28 = arith.addf %21, %27 : vector<8x1xf32>
    %c0_15 = arith.constant 0 : index
    %c0_16 = arith.constant 0 : index
    %c0_17 = arith.constant 0 : index
    %29 = vector.load %arg6[%c0_15, %c0_16, %c0_17] : memref<1x1x1xf32, #tpu.memory_space<vmem>>, vector<1x1x1xf32>
    %cst_18 = arith.constant 5.000000e-01 : f32
    %30 = vector.broadcast %cst_18 : f32 to vector<8x1xf32>
    %31 = arith.mulf %30, %28 : vector<8x1xf32>
    %32 = arith.subf %31, %16 : vector<8x1xf32>
    %33 = vector.shape_cast %32 : vector<8x1xf32> to vector<1x8x1xf32>
    %cst_19 = arith.constant dense<0.000000e+00> : vector<1xf32>
    %34 = vector.multi_reduction <add>, %33, %cst_19 [1, 2] : vector<1x8x1xf32> to vector<1xf32>
    %35 = vector.shape_cast %34 : vector<1xf32> to vector<1x1x1xf32>
    %36 = vector.extract %35[0, 0, 0] : f32 from vector<1x1x1xf32>
    %37 = vector.broadcast %36 : f32 to vector<1x1x1xf32>
    %38 = arith.addf %29, %37 : vector<1x1x1xf32>
    %c0_20 = arith.constant 0 : index
    %c0_21 = arith.constant 0 : index
    %c0_22 = arith.constant 0 : index
    %39 = vector.load %arg6[%c0_20, %c0_21, %c0_22] : memref<1x1x1xf32, #tpu.memory_space<vmem>>, vector<1x1x1xf32>
    tpu.vector_store %arg6[%c0_20, %c0_21, %c0_22], %38 {strides = array<i32>} : memref<1x1x1xf32, #tpu.memory_space<vmem>>, vector<1x1x1xf32>,
    %40 = vector.shape_cast %21 : vector<8x1xf32> to vector<1x8x1xf32>
    %cst_23 = arith.constant dense<0xFF800000> : vector<1xf32>
    %41 = vector.multi_reduction <maximumf>, %40, %cst_23 [1, 2] : vector<1x8x1xf32> to vector<1xf32>
    %42 = vector.shape_cast %41 : vector<1xf32> to vector<1x1x1xf32>
    %43 = vector.extract %42[0, 0, 0] : f32 from vector<1x1x1xf32>
    %44 = vector.broadcast %43 : f32 to vector<1x1xf32>
    %45 = vector.broadcast %44 : vector<1x1xf32> to vector<8x1xf32>
    %46 = arith.subf %21, %45 : vector<8x1xf32>
    %47 = math.exp %46 : vector<8x1xf32>
    %cst_24 = arith.constant dense<0.000000e+00> : vector<1x8xf32>
    %48 = tpu.matmul %47, %24, %cst_24 {dimension_numbers = #tpu.dot_dimension_numbers<[0], [0], [1], [1], [0, 1, 1, 1], [], []>} : vector<8x1xf32>, vector<8x8xf32>, vector<1x8xf32> -> vector<1x8xf32>
    %cst_25 = arith.constant dense<0xFF800000> : vector<8xf32>
    %49 = vector.multi_reduction <maximumf>, %11, %cst_25 [0] : vector<8x8xf32> to vector<8xf32>
    %50 = vector.shape_cast %49 : vector<8xf32> to vector<1x8xf32>
    %c0_26 = arith.constant 0 : index
    %c0_27 = arith.constant 0 : index
    %c0_28 = arith.constant 0 : index
    %51 = vector.load %arg7[%c0_26, %c0_27, %c0_28] : memref<1x1x8xf32, #tpu.memory_space<vmem>>, vector<1x1x8xf32>
    %52 = vector.shape_cast %51 : vector<1x1x8xf32> to vector<1x8xf32>
    %53 = arith.maximumf %52, %50 : vector<1x8xf32>
    %54 = math.log %48 : vector<1x8xf32>
    %55 = vector.broadcast %44 : vector<1x1xf32> to vector<1x8xf32>
    %56 = arith.subf %55, %53 : vector<1x8xf32>
    %57 = arith.addf %54, %56 : vector<1x8xf32>
    %58 = math.exp %57 : vector<1x8xf32>
    %c0_29 = arith.constant 0 : index
    %c0_30 = arith.constant 0 : index
    %c0_31 = arith.constant 0 : index
    %59 = vector.load %arg8[%c0_29, %c0_30, %c0_31] : memref<1x1x8xf32, #tpu.memory_space<vmem>>, vector<1x1x8xf32>
    %60 = vector.shape_cast %59 : vector<1x1x8xf32> to vector<1x8xf32>
    %61 = arith.subf %52, %53 : vector<1x8xf32>
    %62 = math.exp %61 : vector<1x8xf32>
    %63 = arith.mulf %60, %62 : vector<1x8xf32>
    %64 = arith.addf %63, %58 : vector<1x8xf32>
    %c0_32 = arith.constant 0 : index
    %c0_33 = arith.constant 0 : index
    %c0_34 = arith.constant 0 : index
    %65 = vector.load %arg8[%c0_32, %c0_33, %c0_34] : memref<1x1x8xf32, #tpu.memory_space<vmem>>, vector<1x1x8xf32>
    %66 = vector.shape_cast %65 : vector<1x1x8xf32> to vector<1x8xf32>
    %67 = vector.shape_cast %64 : vector<1x8xf32> to vector<1x1x8xf32>
    tpu.vector_store %arg8[%c0_32, %c0_33, %c0_34], %67 {strides = array<i32>} : memref<1x1x8xf32, #tpu.memory_space<vmem>>, vector<1x1x8xf32>,
    %c0_35 = arith.constant 0 : index
    %c0_36 = arith.constant 0 : index
    %c0_37 = arith.constant 0 : index
    %68 = vector.load %arg7[%c0_35, %c0_36, %c0_37] : memref<1x1x8xf32, #tpu.memory_space<vmem>>, vector<1x1x8xf32>
    %69 = vector.shape_cast %68 : vector<1x1x8xf32> to vector<1x8xf32>
    %70 = vector.shape_cast %53 : vector<1x8xf32> to vector<1x1x8xf32>
    tpu.vector_store %arg7[%c0_35, %c0_36, %c0_37], %70 {strides = array<i32>} : memref<1x1x8xf32, #tpu.memory_space<vmem>>, vector<1x1x8xf32>,
    return
  }
  func.func @transform_0(%arg0: i32, %arg1: i32, %arg2: memref<2xf32, #tpu.memory_space<smem>>) -> (i32, i32, i32) {
    %c0_i32 = arith.constant 0 : i32
    %c0_i32_0 = arith.constant 0 : i32
    return %arg0, %arg1, %c0_i32 : i32, i32, i32
  }
  func.func @transform_1(%arg0: i32, %arg1: i32, %arg2: memref<2xf32, #tpu.memory_space<smem>>) -> (i32, i32, i32) {
    %c0_i32 = arith.constant 0 : i32
    %c0_i32_0 = arith.constant 0 : i32
    %c0_i32_1 = arith.constant 0 : i32
    return %arg0, %c0_i32, %c0_i32_0 : i32, i32, i32
  }
  func.func @transform_2(%arg0: i32, %arg1: i32, %arg2: memref<2xf32, #tpu.memory_space<smem>>) -> (i32, i32, i32) {
    %c0_i32 = arith.constant 0 : i32
    %c0_i32_0 = arith.constant 0 : i32
    return %arg0, %arg1, %c0_i32 : i32, i32, i32
  }
  func.func @transform_3(%arg0: i32, %arg1: i32, %arg2: memref<2xf32, #tpu.memory_space<smem>>) -> (i32, i32, i32) {
    %c0_i32 = arith.constant 0 : i32
    %c0_i32_0 = arith.constant 0 : i32
    %c0_i32_1 = arith.constant 0 : i32
    return %arg0, %c0_i32, %c0_i32_0 : i32, i32, i32
  }
  func.func @transform_4(%arg0: i32, %arg1: i32, %arg2: memref<2xf32, #tpu.memory_space<smem>>) -> (i32, i32, i32) {
    %c0_i32 = arith.constant 0 : i32
    %c0_i32_0 = arith.constant 0 : i32
    %c0_i32_1 = arith.constant 0 : i32
    return %arg0, %c0_i32, %c0_i32_0 : i32, i32, i32
  }
  func.func @transform_5(%arg0: i32, %arg1: i32, %arg2: memref<2xf32, #tpu.memory_space<smem>>) -> (i32, i32, i32) {
    %c0_i32 = arith.constant 0 : i32
    %c0_i32_0 = arith.constant 0 : i32
    %c0_i32_1 = arith.constant 0 : i32
    return %arg0, %c0_i32, %c0_i32_0 : i32, i32, i32
  }
  func.func @transform_6(%arg0: i32, %arg1: i32, %arg2: memref<2xf32, #tpu.memory_space<smem>>) -> (i32, i32, i32) {
    %c0_i32 = arith.constant 0 : i32
    %c0_i32_0 = arith.constant 0 : i32
    return %arg0, %arg1, %c0_i32 : i32, i32, i32
  }
}

</mosaic_0001>

<llo_original>
// kernel: tpu_custom_call.1
$region0: #{tpu_custom_call.1}
  #allocation0 [shape = 'u32[]', space=smem, size = 0x4, offset = 0x4, fixed_abs, tag = 'smem constant byte address 0x4 - core index']
  #allocation1 [shape = 'u32[144,128]{1,0:T(1,128)}', space=vmem, size = 0x12000, scoped, tag = 'internal scratch']
  #allocation2 [shape = 's32[1]{0}', space=sflag, size = 0x4, scoped, tag = 'scoped memory for tpu_custom_call.1']
  #allocation3 [shape = 'u8[512]{0}', space=smem, size = 0x200, scoped, tag = 'prefetched SMEM operand 0']
  %s0 = inlined_call_operand.vmem [shape: f32[2], index: 0, kind: input, shape index: {}]
  %s1 = inlined_call_operand.vmem [shape: f32[2,8,32], index: 1, kind: input, shape index: {}]
  %s2 = inlined_call_operand.vmem [shape: f32[2,32,8], index: 2, kind: input, shape index: {}]
  %s3 = inlined_call_operand.vmem [shape: f32[2,8,32], index: 3, kind: input, shape index: {}]
  %s4 = inlined_call_operand.vmem [shape: f32[2,1,1], index: 4, kind: output, shape index: {0}]
  %s5 = inlined_call_operand.hbm [shape: f32[2,1,8], index: 5, kind: output, shape index: {1}]
  %s6 = inlined_call_operand.hbm [shape: f32[2,1,8], index: 6, kind: output, shape index: {2}]
  %s7 = inlined_call_operand.vmem [shape: f32[2,8,1], index: 7, kind: output, shape index: {3}]
  %8 = xla_tuple %s4, %s5, %s6, %s7
  %s9 = sld [smem:[#allocation0]]
  $region73: #{tpu_custom_call.1} parent=0
    _
  %s11 = ssub.s32 1, %s9
  %s12 = scalar_select 0, %s11, %s9
  %s13 = sshll.u32 %s0, 4
  %s14 = int_to_ptr.vmem [resolvable:$true] %s13
  %16 = dma.vmem_to_smem %s14, 16, [#allocation3], [#allocation2]
  %17 = dma.done [#allocation2], 16
  %18 = sfence
  $region1: #{tpu_custom_call.1} parent=0
    #allocation4 [shape = 'u8[1024]{0}', space=vmem, size = 0x400, scoped, tag = 'output window, operand 1']
    #allocation5 [shape = 's32[2]{0}', space=sflag, size = 0x8, scoped, tag = 'scoped memory for tpu_custom_call.1']
    #allocation6 [shape = 'u8[1024]{0}', space=vmem, size = 0x400, scoped, tag = 'output window, operand 2']
    #allocation7 [shape = 's32[2]{0}', space=sflag, size = 0x8, scoped, tag = 'scoped memory for tpu_custom_call.1']
    %19 = vsyncpa [#allocation5], 0
    %s20 = scalar_lea.sflag [#allocation5], 1
    %21 = vsyncpa %s20, 0
    %22 = vsyncpa [#allocation7], 0
    %s23 = scalar_lea.sflag [#allocation7], 1
    %24 = vsyncpa %s23, 0
    loop: start=0, step=1, limit=4
    $region2: #{tpu_custom_call.1} parent=1 // loop_pre_header
      _
    $region3: #{tpu_custom_call.1} parent=1 // loop_header
      %s26 = sphi 0, %s30
      %p27 = scmp.ge.s32.totalorder %s26, 4
      %s33 = sphi 0, %s45
      %s34 = sphi 0, %s41
      %s35 = sphi 0, %s33
      %s36 = sphi 0, %s34
      %s37 = sphi 0, %s35
      %s38 = sphi 0, %s36
      %s50 = sphi 0, %s52
      %s53 = sphi 0, %s50
      %s54 = sphi 0, %s53
      %s70 = sphi 0, %s54
      %s76 = sphi 0, %s78
      %s79 = sphi 0, %s76
      %s80 = sphi 0, %s79
      %s96 = sphi 0, %s80
      %s104 = sphi 0, %s106
      %s107 = sphi 0, %s104
      %s108 = sphi 0, %s107
      %s124 = sphi 0, %s108
      %s130 = sphi 0, %s132
      %s133 = sphi 0, %s130
      %s134 = sphi 0, %s133
      %s150 = sphi 0, %s134
      %s156 = sphi 0, %s158
      %s159 = sphi 0, %s156
      %s160 = sphi 0, %s159
      %s176 = sphi 0, %s160
      %s182 = sphi 0, %s184
      %s185 = sphi 0, %s182
      %s186 = sphi 0, %s185
      %s202 = sphi 0, %s186
      %s210 = sphi 0, %s212
      %s213 = sphi 0, %s210
      %s214 = sphi 0, %s213
      %s230 = sphi 0, %s214
    $region4: #{tpu_custom_call.1} parent=1 // loop_header_branch
      %29 = sbr.rel (%p27) target = $region8
    $region5: #{tpu_custom_call.1} parent=1 // loop_body
      %s31 = ssub.s32 %s26, 1
      %s32 = ssub.s32 %s26, 2
      %s39 = sadd.s32 1, %s34
      %p40 = scmp.ge.s32.totalorder %s39, 1
      %s41 = scalar_select %p40, 0, %s39
      %s42 = sadd.s32 1, %s33
      %s43 = scalar_select %p40, %s42, %s33
      %p44 = scmp.ge.s32.totalorder %s43, 2
      %s45 = scalar_select %p44, 0, %s43
      %s46 = ssub.s32 %s33, %s45
      %s47 = ssub.s32 %s34, %s41
      %s48 = sor.u32 %s46, %s47
      %p49 = scmp.eq.s32.totalorder %s48, 0
      %s51 = sadd.s32 %s50, 1
      %s52 = scalar_select %p49, %s50, %s51
      %p55 = pneg %p49
      %p56 = scmp.eq.s32.totalorder %s26, 1
      %p57 = por %p55, %p56
      %p58 = scmp.ne.s32.totalorder %s50, %s53
      %p59 = scmp.eq.s32.totalorder %s26, 0
      %p60 = por %p58, %p59
      %p61 = scmp.ne.s32.totalorder %s50, %s53
      %p62 = scmp.eq.s32.totalorder %s31, 1
      %p63 = por %p61, %p62
      %p64 = scmp.ne.s32.totalorder %s53, %s54
      %p65 = scmp.eq.s32.totalorder %s31, 0
      %p66 = por %p64, %p65
      %p67 = scmp.ne.s32.totalorder %s53, %s54
      %p68 = scmp.eq.s32.totalorder %s32, 1
      %p69 = por %p67, %p68
      %p71 = scmp.ne.s32.totalorder %s54, %s70
      %p72 = scmp.eq.s32.totalorder %s32, 0
      %p73 = por %p71, %p72
      %s74 = ssub.s32 %s33, %s45
      %p75 = scmp.eq.s32.totalorder %s74, 0
      %s77 = sadd.s32 %s76, 1
      %s78 = scalar_select %p75, %s76, %s77
      %p81 = pneg %p75
      %p82 = scmp.eq.s32.totalorder %s26, 1
      %p83 = por %p81, %p82
      %p84 = scmp.ne.s32.totalorder %s76, %s79
      %p85 = scmp.eq.s32.totalorder %s26, 0
      %p86 = por %p84, %p85
      %p87 = scmp.ne.s32.totalorder %s76, %s79
      %p88 = scmp.eq.s32.totalorder %s31, 1
      %p89 = por %p87, %p88
      %p90 = scmp.ne.s32.totalorder %s79, %s80
      %p91 = scmp.eq.s32.totalorder %s31, 0
      %p92 = por %p90, %p91
      %p93 = scmp.ne.s32.totalorder %s79, %s80
      %p94 = scmp.eq.s32.totalorder %s32, 1
      %p95 = por %p93, %p94
      %p97 = scmp.ne.s32.totalorder %s80, %s96
      %p98 = scmp.eq.s32.totalorder %s32, 0
      %p99 = por %p97, %p98
      %s100 = ssub.s32 %s33, %s45
      %s101 = ssub.s32 %s34, %s41
      %s102 = sor.u32 %s100, %s101
      %p103 = scmp.eq.s32.totalorder %s102, 0
      %s105 = sadd.s32 %s104, 1
      %s106 = scalar_select %p103, %s104, %s105
      %p109 = pneg %p103
      %p110 = scmp.eq.s32.totalorder %s26, 1
      %p111 = por %p109, %p110
      %p112 = scmp.ne.s32.totalorder %s104, %s107
      %p113 = scmp.eq.s32.totalorder %s26, 0
      %p114 = por %p112, %p113
      %p115 = scmp.ne.s32.totalorder %s104, %s107
      %p116 = scmp.eq.s32.totalorder %s31, 1
      %p117 = por %p115, %p116
      %p118 = scmp.ne.s32.totalorder %s107, %s108
      %p119 = scmp.eq.s32.totalorder %s31, 0
      %p120 = por %p118, %p119
      %p121 = scmp.ne.s32.totalorder %s107, %s108
      %p122 = scmp.eq.s32.totalorder %s32, 1
      %p123 = por %p121, %p122
      %p125 = scmp.ne.s32.totalorder %s108, %s124
      %p126 = scmp.eq.s32.totalorder %s32, 0
      %p127 = por %p125, %p126
      %s128 = ssub.s32 %s33, %s45
      %p129 = scmp.eq.s32.totalorder %s128, 0
      %s131 = sadd.s32 %s130, 1
      %s132 = scalar_select %p129, %s130, %s131
      %p135 = pneg %p129
      %p136 = scmp.eq.s32.totalorder %s26, 1
      %p137 = por %p135, %p136
      %p138 = scmp.ne.s32.totalorder %s130, %s133
      %p139 = scmp.eq.s32.totalorder %s26, 0
      %p140 = por %p138, %p139
      %p141 = scmp.ne.s32.totalorder %s130, %s133
      %p142 = scmp.eq.s32.totalorder %s31, 1
      %p143 = por %p141, %p142
      %p144 = scmp.ne.s32.totalorder %s133, %s134
      %p145 = scmp.eq.s32.totalorder %s31, 0
      %p146 = por %p144, %p145
      %p147 = scmp.ne.s32.totalorder %s133, %s134
      %p148 = scmp.eq.s32.totalorder %s32, 1
      %p149 = por %p147, %p148
      %p151 = scmp.ne.s32.totalorder %s134, %s150
      %p152 = scmp.eq.s32.totalorder %s32, 0
      %p153 = por %p151, %p152
      %s154 = ssub.s32 %s33, %s45
      %p155 = scmp.eq.s32.totalorder %s154, 0
      %s157 = sadd.s32 %s156, 1
      %s158 = scalar_select %p155, %s156, %s157
      %p161 = pneg %p155
      %p162 = scmp.eq.s32.totalorder %s26, 1
      %p163 = por %p161, %p162
      %p164 = scmp.ne.s32.totalorder %s156, %s159
      %p165 = scmp.eq.s32.totalorder %s26, 0
      %p166 = por %p164, %p165
      %p167 = scmp.ne.s32.totalorder %s156, %s159
      %p168 = scmp.eq.s32.totalorder %s31, 1
      %p169 = por %p167, %p168
      %p170 = scmp.ne.s32.totalorder %s159, %s160
      %p171 = scmp.eq.s32.totalorder %s31, 0
      %p172 = por %p170, %p171
      %p173 = scmp.ne.s32.totalorder %s159, %s160
      %p174 = scmp.eq.s32.totalorder %s32, 1
      %p175 = por %p173, %p174
      %p177 = scmp.ne.s32.totalorder %s160, %s176
      %p178 = scmp.eq.s32.totalorder %s32, 0
      %p179 = por %p177, %p178
      %s180 = ssub.s32 %s33, %s45
      %p181 = scmp.eq.s32.totalorder %s180, 0
      %s183 = sadd.s32 %s182, 1
      %s184 = scalar_select %p181, %s182, %s183
      %p187 = pneg %p181
      %p188 = scmp.eq.s32.totalorder %s26, 1
      %p189 = por %p187, %p188
      %p190 = scmp.ne.s32.totalorder %s182, %s185
      %p191 = scmp.eq.s32.totalorder %s26, 0
      %p192 = por %p190, %p191
      %p193 = scmp.ne.s32.totalorder %s182, %s185
      %p194 = scmp.eq.s32.totalorder %s31, 1
      %p195 = por %p193, %p194
      %p196 = scmp.ne.s32.totalorder %s185, %s186
      %p197 = scmp.eq.s32.totalorder %s31, 0
      %p198 = por %p196, %p197
      %p199 = scmp.ne.s32.totalorder %s185, %s186
      %p200 = scmp.eq.s32.totalorder %s32, 1
      %p201 = por %p199, %p200
      %p203 = scmp.ne.s32.totalorder %s186, %s202
      %p204 = scmp.eq.s32.totalorder %s32, 0
      %p205 = por %p203, %p204
      %s206 = ssub.s32 %s33, %s45
      %s207 = ssub.s32 %s34, %s41
      %s208 = sor.u32 %s206, %s207
      %p209 = scmp.eq.s32.totalorder %s208, 0
      %s211 = sadd.s32 %s210, 1
      %s212 = scalar_select %p209, %s210, %s211
      %p215 = pneg %p209
      %p216 = scmp.eq.s32.totalorder %s26, 1
      %p217 = por %p215, %p216
      %p218 = scmp.ne.s32.totalorder %s210, %s213
      %p219 = scmp.eq.s32.totalorder %s26, 0
      %p220 = por %p218, %p219
      %p221 = scmp.ne.s32.totalorder %s210, %s213
      %p222 = scmp.eq.s32.totalorder %s31, 1
      %p223 = por %p221, %p222
      %p224 = scmp.ne.s32.totalorder %s213, %s214
      %p225 = scmp.eq.s32.totalorder %s31, 0
      %p226 = por %p224, %p225
      %p227 = scmp.ne.s32.totalorder %s213, %s214
      %p228 = scmp.eq.s32.totalorder %s32, 1
      %p229 = por %p227, %p228
      %p231 = scmp.ne.s32.totalorder %s214, %s230
      %p232 = scmp.eq.s32.totalorder %s32, 0
      %p233 = por %p231, %p232
      %p234 = scmp.le.s32.totalorder 1, %s26
      %p235 = scmp.lt.s32.totalorder %s26, 3
      %p236 = pnand %p234, %p235
      %p237 = pneg %p236
      // Predicated region
      $region9: #{tpu_custom_call.1} parent=5 // pred_check
        _
      $region10: #{tpu_custom_call.1} parent=5 // pred_check_branch
        %239 = sbr.rel (%p236) target = $region12
      $region11: #{tpu_custom_call.1} parent=5 // pred_region
        %s240 = ssub.s32 %s26, 1
      $region12: #{tpu_custom_call.1} parent=5 // pred_fallthru
        _
      %p241 = scmp.lt.s32.totalorder %s26, 2
      // Predicated region
      $region13: #{tpu_custom_call.1} parent=5 // pred_check
        %p242 = pneg %p241
      $region14: #{tpu_custom_call.1} parent=5 // pred_check_branch
        %244 = sbr.rel (%p242) target = $region16
      $region15: #{tpu_custom_call.1} parent=5 // pred_region
        // Predicated region
        $region17: #{tpu_custom_call.1} parent=15 // pred_check
          %p245 = pneg %p60
        $region18: #{tpu_custom_call.1} parent=15 // pred_check_branch
          %247 = sbr.rel (%p245) target = $region20
        $region19: #{tpu_custom_call.1} parent=15 // pred_region
          %p248 = scmp.lt.s32.totalorder %s33, 1
          %s249 = scalar_select %p248, %s33, 1
          %p250 = scmp.lt.s32.totalorder %s34, 0
          %s251 = scalar_select %p250, %s34, 0
          %s252 = sadd.s32 %s251, %s249
          %s253 = smul.addr %s252, 8
          %s254 = scalar_lea.vmem %s1, %s253
        $region20: #{tpu_custom_call.1} parent=15 // pred_fallthru
          _
        // Predicated region
        $region21: #{tpu_custom_call.1} parent=15 // pred_check
          %p255 = pneg %p86
        $region22: #{tpu_custom_call.1} parent=15 // pred_check_branch
          %257 = sbr.rel (%p255) target = $region24
        $region23: #{tpu_custom_call.1} parent=15 // pred_region
          %p258 = scmp.lt.s32.totalorder %s33, 1
          %s259 = scalar_select %p258, %s33, 1
          %s260 = smul.addr %s259, 4
          %s261 = smul.addr %s260, 8
          %s262 = scalar_lea.vmem %s2, %s261
        $region24: #{tpu_custom_call.1} parent=15 // pred_fallthru
          _
        // Predicated region
        $region25: #{tpu_custom_call.1} parent=15 // pred_check
          %p263 = pneg %p114
        $region26: #{tpu_custom_call.1} parent=15 // pred_check_branch
          %265 = sbr.rel (%p263) target = $region28
        $region27: #{tpu_custom_call.1} parent=15 // pred_region
          %p266 = scmp.lt.s32.totalorder %s33, 1
          %s267 = scalar_select %p266, %s33, 1
          %p268 = scmp.lt.s32.totalorder %s34, 0
          %s269 = scalar_select %p268, %s34, 0
          %s270 = sadd.s32 %s269, %s267
          %s271 = smul.addr %s270, 8
          %s272 = scalar_lea.vmem %s3, %s271
        $region28: #{tpu_custom_call.1} parent=15 // pred_fallthru
          _
      $region16: #{tpu_custom_call.1} parent=5 // pred_fallthru
        _
      %p273 = scmp.le.s32.totalorder 1, %s26
      %p274 = scmp.lt.s32.totalorder %s26, 3
      %p275 = pnand %p273, %p274
      %p276 = pneg %p275
      // Predicated region
      $region29: #{tpu_custom_call.1} parent=5 // pred_check
        _
      $region30: #{tpu_custom_call.1} parent=5 // pred_check_branch
        %278 = sbr.rel (%p275) target = $region32
      $region31: #{tpu_custom_call.1} parent=5 // pred_region
        %s279 = ssub.s32 %s26, 1
        %p280 = scmp.lt.s32.totalorder %s35, 1
        %s281 = scalar_select %p280, %s35, 1
        %p282 = scmp.lt.s32.totalorder %s36, 0
        %s283 = scalar_select %p282, %s36, 0
        %s284 = sadd.s32 %s283, %s281
        %s285 = smul.addr %s284, 8
        %s286 = scalar_lea.vmem %s1, %s285
        %p287 = pneg %p66
        %p288 = pneg %p63
        %p289 = scmp.lt.s32.totalorder %s35, 1
        %s290 = scalar_select %p289, %s35, 1
        %s291 = smul.addr %s290, 4
        %s292 = smul.addr %s291, 8
        %s293 = scalar_lea.vmem %s2, %s292
        %p294 = pneg %p92
        %p295 = pneg %p89
        %p296 = scmp.lt.s32.totalorder %s35, 1
        %s297 = scalar_select %p296, %s35, 1
        %p298 = scmp.lt.s32.totalorder %s36, 0
        %s299 = scalar_select %p298, %s36, 0
        %s300 = sadd.s32 %s299, %s297
        %s301 = smul.addr %s300, 8
        %s302 = scalar_lea.vmem %s3, %s301
        %p303 = pneg %p120
        %p304 = pneg %p117
        %p305 = pneg %p146
        %p306 = pneg %p143
        %p307 = scmp.lt.s32.totalorder %s35, 1
        %s308 = scalar_select %p307, %s35, 1
        %s309 = scalar_lea.vmem %s4, %s308
        %p310 = pneg %p172
        %p311 = pneg %p169
        %s312 = sand.u32 %s159, 1
        %s313 = scalar_lea.sflag [#allocation5], %s312
        %s314 = sand.u32 %s159, 1
        %s315 = scalar_lea.vmem [#allocation4], %s314
        %p316 = pneg %p198
        %p317 = pneg %p195
        %s318 = sand.u32 %s185, 1
        %s319 = scalar_lea.sflag [#allocation7], %s318
        %s320 = sand.u32 %s185, 1
        %s321 = scalar_lea.vmem [#allocation6], %s320
        %p322 = pneg %p226
        %p323 = pneg %p223
        %p324 = scmp.lt.s32.totalorder %s35, 1
        %s325 = scalar_select %p324, %s35, 1
        %p326 = scmp.lt.s32.totalorder %s36, 0
        %s327 = scalar_select %p326, %s36, 0
        %s328 = sadd.s32 %s327, %s325
        %s329 = smul.addr %s328, 8
        %s330 = scalar_lea.vmem %s7, %s329
        %p331 = scmp.lt.s32.totalorder %s35, 1
        %s332 = scalar_select %p331, %s35, 1
        %p333 = scmp.lt.s32.totalorder %s36, 0
        %s334 = scalar_select %p333, %s36, 0
        %s335 = sadd.s32 %s334, %s332
        %s336 = smul.addr %s335, 8
        %s337 = scalar_lea.vmem %s1, %s336
        %p338 = scmp.lt.s32.totalorder %s35, 1
        %s339 = scalar_select %p338, %s35, 1
        %s340 = smul.addr %s339, 4
        %s341 = smul.addr %s340, 8
        %s342 = scalar_lea.vmem %s2, %s341
        %p343 = scmp.lt.s32.totalorder %s35, 1
        %s344 = scalar_select %p343, %s35, 1
        %p345 = scmp.lt.s32.totalorder %s36, 0
        %s346 = scalar_select %p345, %s36, 0
        %s347 = sadd.s32 %s346, %s344
        %s348 = smul.addr %s347, 8
        %s349 = scalar_lea.vmem %s3, %s348
        %p350 = scmp.lt.s32.totalorder %s35, 1
        %s351 = scalar_select %p350, %s35, 1
        %s352 = scalar_lea.vmem %s4, %s351
        %p353 = scmp.lt.s32.totalorder %s35, 1
        %s354 = scalar_select %p353, %s35, 1
        %p355 = scmp.lt.s32.totalorder %s36, 0
        %s356 = scalar_select %p355, %s36, 0
        %s357 = sadd.s32 %s356, %s354
        %s358 = smul.addr %s357, 8
        %s359 = scalar_lea.vmem %s7, %s358
        %p360 = scmp.eq.s32.totalorder %s36, 0
        // Predicated region
        $region33: #{tpu_custom_call.1} parent=31 // pred_check
          %p361 = pneg %p360
        $region34: #{tpu_custom_call.1} parent=31 // pred_check_branch
          %363 = sbr.rel (%p361) target = $region36
        $region35: #{tpu_custom_call.1} parent=31 // pred_region
          %vm364 = vcmask 0
          %365 = vst.msk [vmem:[%s352] sm:$0x1] %vm364, 0.0
          %vm366 = vcmask 57344
          %367 = vst.msk [vmem:[%s315] sm:$0x1] %vm366, -inf
          %368 = vst.msk [vmem:[%s321] sm:$0x1] %vm366, 0.0
        $region36: #{tpu_custom_call.1} parent=31 // pred_fallthru
          _
        %s369 = sld [smem:[#allocation3 + %s35]]
        %v370 = vld [vmem:[%s337] sm:$0xff]
        %v371 = vstv %s369
        %v372 = vmul.f32 %v370, %v371
        %v373 = vld [vmem:[%s342] sm:$0xff]
        %v374 = vld [vmem:[%s342 + $0x8] sm:$0xff]
        %v375 = vld [vmem:[%s342 + $0x10] sm:$0xff]
        %v376 = vld [vmem:[%s342 + $0x18] sm:$0xff]
        %vm377 = vcmask 261120
        %v379 = vsel %vm377, %v372, 0
        %381 = vmatprep.subr.mxu0 0.0
        %382 = vmatpush1.msra.mxu0 %v373
        %383 = vmatprep.subr.mxu0 0.0
        %384 = vmatpush1.msra.mxu0 %v374
        %385 = vmatprep.subr.mxu0 0.0
        %386 = vmatpush1.msra.mxu0 %v375
        %387 = vmatprep.subr.mxu0 0.0
        %388 = vmatpush1.msra.mxu0 %v376
        %389 = vmatprep.subr.mxu0 0.0
        %390 = vmatpush1.msra.mxu0 0.0
        %391 = vmatprep.subr.mxu0 0.0
        %392 = vmatpush1.msra.mxu0 0.0
        %393 = vmatprep.subr.mxu0 0.0
        %394 = vmatpush1.msra.mxu0 0.0
        %395 = vmatprep.subr.mxu0 0.0
        %396 = vmatpush1.msra.mxu0 0.0
        %397 = vmatprep.subr.mxu0 0.0
        %398 = vmatpush1.msra.mxu0 0.0
        %399 = vmatprep.subr.mxu0 0.0
        %400 = vmatpush1.msra.mxu0 0.0
        %401 = vmatprep.subr.mxu0 0.0
        %402 = vmatpush1.msra.mxu0 0.0
        %403 = vmatprep.subr.mxu0 0.0
        %404 = vmatpush1.msra.mxu0 0.0
        %405 = vmatprep.subr.mxu0 0.0
        %406 = vmatpush1.msra.mxu0 0.0
        %407 = vmatprep.subr.mxu0 0.0
        %408 = vmatpush1.msra.mxu0 0.0
        %409 = vmatprep.subr.mxu0 0.0
        %410 = vmatpush1.msra.mxu0 0.0
        %411 = vmatprep.subr.mxu0 0.0
        %412 = vmatpush1.msra.mxu0 0.0
        %413 = vmatprep.subr.mxu0 0.0
        %414 = vmatpush1.msra.mxu0 0.0
        %415 = vmatprep.subr.mxu0 0.0
        %416 = vmatpush1.msra.mxu0 0.0
        %417 = vmatprep.subr.mxu0 0.0
        %418 = vmatpush1.msra.mxu0 0.0
        %419 = vmatprep.subr.mxu0 0.0
        %420 = vmatpush1.msra.mxu0 0.0
        %421 = vmatprep.subr.mxu0 0.0
        %422 = vmatpush1.msra.mxu0 0.0
        %423 = vmatprep.subr.mxu0 0.0
        %424 = vmatpush1.msra.mxu0 0.0
        %425 = vmatprep.subr.mxu0 0.0
        %426 = vmatpush1.msra.mxu0 0.0
        %427 = vmatprep.subr.mxu0 0.0
        %428 = vmatpush1.msra.mxu0 0.0
        %429 = vmatprep.subr.mxu0 0.0
        %430 = vmatpush1.msra.mxu0 0.0
        %431 = vmatprep.subr.mxu0 0.0
        %432 = vmatpush1.msra.mxu0 0.0
        %433 = vmatprep.subr.mxu0 0.0
        %434 = vmatpush1.msra.mxu0 0.0
        %435 = vmatprep.subr.mxu0 0.0
        %436 = vmatpush1.msra.mxu0 0.0
        %437 = vmatprep.subr.mxu0 0.0
        %438 = vmatpush1.msra.mxu0 0.0
        %439 = vmatprep.subr.mxu0 0.0
        %440 = vmatpush1.msra.mxu0 0.0
        %441 = vmatprep.subr.mxu0 0.0
        %442 = vmatpush1.msra.mxu0 0.0
        %443 = vmatprep.subr.mxu0 0.0
        %444 = vmatpush1.msra.mxu0 0.0
        %445 = vmatprep.mubr.f32.mxu0 0.0
        %446 = vmatmul.mubr.f32.gmra.mrb[0].mxu0 %v379
        %v447 = vpop.f32.mrb[0].mxu0
        %v448 = vadd.f32 0.0, %v447
        %v449 = vpop.f32.mrb[0].mxu0
        %450 = vdwg.mxu0
        %v451 = vld [vmem:[%s349] sm:$0xff]
        %v452 = vmul.f32 %v372, %v451
        %v453 = vsel %vm377, %v452, 0.0
        %454 = vadd.xlane.f32.xlu0 %v453
        %v455 = vpop.xlane.xlu0 %454
        %vm456 = vcmask 7168
        %457 = vst.msk [vmem:[%s359] sm:$0xff] %vm456, %v455
        %vm458 = vcmask 64512
        %v459 = vsel %vm458, %v448, -inf
        %460 = vmax.xlane.f32.xlu0 %v459
        %v461 = vpop.xlane.xlu0 %460
        %v462 = vsub.f32 %v448, %v461
        %v463 = vmul.f32 %v462, 1.442695
        %v464 = vpow.pop %v463
        %v465 = vsel %vm458, %v464, 0.0
        %466 = vadd.xlane.f32.xlu0 %v465
        %v467 = vpop.xlane.xlu0 %466
        %v468 = vlog2.pop %v467
        %v469 = vmul.f32 %v468, 0.6931472
        %v470 = vadd.f32 %v461, %v469
        %v471 = vld [vmem:[%s352] sm:$0x1]
        %v472 = vmul.f32 %v470, 0.5
        %v473 = vsub.f32 %v472, %v455
        %v474 = vsel %vm456, %v473, 0.0
        %475 = vadd.xlane.f32.xlu0 %v474
        %v476 = vpop.xlane.xlu0 %475
        %v477 = vrot.slane %v476, 4
        %v478 = vadd.f32 %v476, %v477
        %v479 = vrot.slane %v478, 2
        %v480 = vadd.f32 %v478, %v479
        %v481 = vrot.slane %v480, 1
        %v482 = vadd.f32 %v480, %v481
        %s483 = vtos %v482
        %v484 = vstv %s483
        %v485 = vadd.f32 %v471, %v484
        %vm486 = vcmask 0
        %487 = vst.msk [vmem:[%s352] sm:$0x1] %vm486, %v485
        %v488 = vrot.slane %v461, 4
        %v489 = vmax.f32 %v461, %v488
        %v490 = vrot.slane %v489, 2
        %v491 = vmax.f32 %v489, %v490
        %v492 = vrot.slane %v491, 1
        %v493 = vmax.f32 %v491, %v492
        %s494 = vtos %v493
        %v495 = vstv %s494
        %v496 = vsub.f32 %v461, %v495
        %v497 = vmul.f32 %v496, 1.442695
        %v498 = vpow.pop %v497
        %499 = vxpose.xlu0.b32.start [1/16] %v498, 128
        %500 = vxpose.xlu0.b32.cont [2/16] 0.0, 128
        %501 = vxpose.xlu0.b32.cont [3/16] 0.0, 128
        %502 = vxpose.xlu0.b32.cont [4/16] 0.0, 128
        %503 = vxpose.xlu0.b32.cont [5/16] 0.0, 128
        %504 = vxpose.xlu0.b32.cont [6/16] 0.0, 128
        %505 = vxpose.xlu0.b32.cont [7/16] 0.0, 128
        %506 = vxpose.xlu0.b32.cont [8/16] 0.0, 128
        %507 = vxpose.xlu0.b32.cont [9/16] 0.0, 128
        %508 = vxpose.xlu0.b32.cont [10/16] 0.0, 128
        %509 = vxpose.xlu0.b32.cont [11/16] 0.0, 128
        %510 = vxpose.xlu0.b32.cont [12/16] 0.0, 128
        %511 = vxpose.xlu0.b32.cont [13/16] 0.0, 128
        %512 = vxpose.xlu0.b32.cont [14/16] 0.0, 128
        %513 = vxpose.xlu0.b32.cont [15/16] 0.0, 128
        %514 = vxpose.xlu0.b32.end [16/16] 0.0, 128
        %v515 = vpop.trf.xlu0
        %v516 = vpop.trf.xlu0
        %v517 = vpop.trf.xlu0
        %v518 = vpop.trf.xlu0
        %v519 = vpop.trf.xlu0
        %v520 = vpop.trf.xlu0
        %v521 = vpop.trf.xlu0
        %v522 = vpop.trf.xlu0
        %v523 = vpop.trf.xlu0
        %v524 = vpop.trf.xlu0
        %v525 = vpop.trf.xlu0
        %v526 = vpop.trf.xlu0
        %v527 = vpop.trf.xlu0
        %v528 = vpop.trf.xlu0
        %v529 = vpop.trf.xlu0
        %v530 = vpop.trf.xlu0
        %v532 = vsel %vm458, %v515, 0
        %534 = vmatprep.subr.mxu0 0.0
        %535 = vmatpush1.msra.mxu0 %v464
        %536 = vmatprep.subr.mxu0 0.0
        %537 = vmatpush1.msra.mxu0 0.0
        %538 = vmatprep.subr.mxu0 0.0
        %539 = vmatpush1.msra.mxu0 0.0
        %540 = vmatprep.subr.mxu0 0.0
        %541 = vmatpush1.msra.mxu0 0.0
        %542 = vmatprep.subr.mxu0 0.0
        %543 = vmatpush1.msra.mxu0 0.0
        %544 = vmatprep.subr.mxu0 0.0
        %545 = vmatpush1.msra.mxu0 0.0
        %546 = vmatprep.subr.mxu0 0.0
        %547 = vmatpush1.msra.mxu0 0.0
        %548 = vmatprep.subr.mxu0 0.0
        %549 = vmatpush1.msra.mxu0 0.0
        %550 = vmatprep.subr.mxu0 0.0
        %551 = vmatpush1.msra.mxu0 0.0
        %552 = vmatprep.subr.mxu0 0.0
        %553 = vmatpush1.msra.mxu0 0.0
        %554 = vmatprep.subr.mxu0 0.0
        %555 = vmatpush1.msra.mxu0 0.0
        %556 = vmatprep.subr.mxu0 0.0
        %557 = vmatpush1.msra.mxu0 0.0
        %558 = vmatprep.subr.mxu0 0.0
        %559 = vmatpush1.msra.mxu0 0.0
        %560 = vmatprep.subr.mxu0 0.0
        %561 = vmatpush1.msra.mxu0 0.0
        %562 = vmatprep.subr.mxu0 0.0
        %563 = vmatpush1.msra.mxu0 0.0
        %564 = vmatprep.subr.mxu0 0.0
        %565 = vmatpush1.msra.mxu0 0.0
        %566 = vmatprep.subr.mxu0 0.0
        %567 = vmatpush1.msra.mxu0 0.0
        %568 = vmatprep.subr.mxu0 0.0
        %569 = vmatpush1.msra.mxu0 0.0
        %570 = vmatprep.subr.mxu0 0.0
        %571 = vmatpush1.msra.mxu0 0.0
        %572 = vmatprep.subr.mxu0 0.0
        %573 = vmatpush1.msra.mxu0 0.0
        %574 = vmatprep.subr.mxu0 0.0
        %575 = vmatpush1.msra.mxu0 0.0
        %576 = vmatprep.subr.mxu0 0.0
        %577 = vmatpush1.msra.mxu0 0.0
        %578 = vmatprep.subr.mxu0 0.0
        %579 = vmatpush1.msra.mxu0 0.0
        %580 = vmatprep.subr.mxu0 0.0
        %581 = vmatpush1.msra.mxu0 0.0
        %582 = vmatprep.subr.mxu0 0.0
        %583 = vmatpush1.msra.mxu0 0.0
        %584 = vmatprep.subr.mxu0 0.0
        %585 = vmatpush1.msra.mxu0 0.0
        %586 = vmatprep.subr.mxu0 0.0
        %587 = vmatpush1.msra.mxu0 0.0
        %588 = vmatprep.subr.mxu0 0.0
        %589 = vmatpush1.msra.mxu0 0.0
        %590 = vmatprep.subr.mxu0 0.0
        %591 = vmatpush1.msra.mxu0 0.0
        %592 = vmatprep.subr.mxu0 0.0
        %593 = vmatpush1.msra.mxu0 0.0
        %594 = vmatprep.subr.mxu0 0.0
        %595 = vmatpush1.msra.mxu0 0.0
        %596 = vmatprep.subr.mxu0 0.0
        %597 = vmatpush1.msra.mxu0 0.0
        %598 = vmatprep.mubr.f32.mxu0 0.0
        %599 = vmatmul.mubr.f32.gmra.mrb[0].mxu0 %v532
        %v600 = vpop.f32.mrb[0].mxu0
        %v601 = vadd.f32 0.0, %v600
        %v602 = vpop.f32.mrb[0].mxu0
        %603 = vdwg.mxu0
        %v604 = vrot.slane %v459, 4
        %v605 = vmax.f32 %v459, %v604
        %v606 = vrot.slane %v605, 2
        %v607 = vmax.f32 %v605, %v606
        %v608 = vrot.slane %v607, 1
        %v609 = vmax.f32 %v607, %v608
        %v610 = vld [vmem:[%s315] sm:$0x1]
        %v611 = vmax.f32 %v610, %v609
        %v612 = vlog2.pop %v601
        %v613 = vmul.f32 %v612, 0.6931472
        %v614 = vsub.f32 %v495, %v611
        %v615 = vadd.f32 %v613, %v614
        %v616 = vmul.f32 %v615, 1.442695
        %v617 = vpow.pop %v616
        %v618 = vld [vmem:[%s321] sm:$0x1]
        %v619 = vsub.f32 %v610, %v611
        %v620 = vmul.f32 %v619, 1.442695
        %v621 = vpow.pop %v620
        %v622 = vmul.f32 %v618, %v621
        %v623 = vadd.f32 %v622, %v617
        %vm624 = vcmask 57344
        %625 = vst.msk [vmem:[%s321] sm:$0x1] %vm624, %v623
        %626 = vst.msk [vmem:[%s315] sm:$0x1] %vm624, %v611
        %p627 = scmp.lt.s32.totalorder %s35, 1
        %s628 = scalar_select %p627, %s35, 1
        %s629 = scalar_lea.vmem %s4, %s628
        %s630 = sand.u32 %s159, 1
        %s631 = scalar_lea.sflag [#allocation5], %s630
        %s632 = sand.u32 %s159, 1
        %s633 = scalar_lea.vmem [#allocation4], %s632
        %s634 = sand.u32 %s185, 1
        %s635 = scalar_lea.sflag [#allocation7], %s634
        %s636 = sand.u32 %s185, 1
        %s637 = scalar_lea.vmem [#allocation6], %s636
        %p638 = scmp.lt.s32.totalorder %s35, 1
        %s639 = scalar_select %p638, %s35, 1
        %p640 = scmp.lt.s32.totalorder %s36, 0
        %s641 = scalar_select %p640, %s36, 0
        %s642 = sadd.s32 %s641, %s639
        %s643 = smul.addr %s642, 8
        %s644 = scalar_lea.vmem %s7, %s643
        // Predicated region
        $region37: #{tpu_custom_call.1} parent=31 // pred_check
          %p645 = pneg %p143
        $region38: #{tpu_custom_call.1} parent=31 // pred_check_branch
          %647 = sbr.rel (%p645) target = $region40
        $region39: #{tpu_custom_call.1} parent=31 // pred_region
          _
        $region40: #{tpu_custom_call.1} parent=31 // pred_fallthru
          _
        // Predicated region
        $region41: #{tpu_custom_call.1} parent=31 // pred_check
          %p648 = pneg %p169
        $region42: #{tpu_custom_call.1} parent=31 // pred_check_branch
          %650 = sbr.rel (%p648) target = $region44
        $region43: #{tpu_custom_call.1} parent=31 // pred_region
          %s652 = ssub.s32 16, 16
          %653 = vsyncadd %s631, %s652
          %s654 = smul.addr %s35, 16
          %s655 = scalar_lea.hbm %s5, %s654
          %s657 = sshll.u32 %s633, 4
          %s658 = int_to_ptr.vmem [resolvable:$true] %s657
          %660 = dma.vmem_to_hbm [thread:$0]  %s658, 16, %s655, %s631
        $region44: #{tpu_custom_call.1} parent=31 // pred_fallthru
          _
        // Predicated region
        $region45: #{tpu_custom_call.1} parent=31 // pred_check
          %p661 = pneg %p195
        $region46: #{tpu_custom_call.1} parent=31 // pred_check_branch
          %663 = sbr.rel (%p661) target = $region48
        $region47: #{tpu_custom_call.1} parent=31 // pred_region
          %s665 = ssub.s32 16, 16
          %666 = vsyncadd %s635, %s665
          %s667 = smul.addr %s35, 16
          %s668 = scalar_lea.hbm %s6, %s667
          %s670 = sshll.u32 %s637, 4
          %s671 = int_to_ptr.vmem [resolvable:$true] %s670
          %673 = dma.vmem_to_hbm [thread:$0]  %s671, 16, %s668, %s635
        $region48: #{tpu_custom_call.1} parent=31 // pred_fallthru
          _
        // Predicated region
        $region49: #{tpu_custom_call.1} parent=31 // pred_check
          %p674 = pneg %p223
        $region50: #{tpu_custom_call.1} parent=31 // pred_check_branch
          %676 = sbr.rel (%p674) target = $region52
        $region51: #{tpu_custom_call.1} parent=31 // pred_region
          _
        $region52: #{tpu_custom_call.1} parent=31 // pred_fallthru
          _
      $region32: #{tpu_custom_call.1} parent=5 // pred_fallthru
        _
      %p677 = scmp.le.s32.totalorder 2, %s26
      // Predicated region
      $region53: #{tpu_custom_call.1} parent=5 // pred_check
        %p678 = pneg %p677
      $region54: #{tpu_custom_call.1} parent=5 // pred_check_branch
        %680 = sbr.rel (%p678) target = $region56
      $region55: #{tpu_custom_call.1} parent=5 // pred_region
        %s681 = ssub.s32 %s26, 2
        // Predicated region
        $region57: #{tpu_custom_call.1} parent=55 // pred_check
          %p682 = pneg %p149
        $region58: #{tpu_custom_call.1} parent=55 // pred_check_branch
          %684 = sbr.rel (%p682) target = $region60
        $region59: #{tpu_custom_call.1} parent=55 // pred_region
          %p685 = scmp.lt.s32.totalorder %s37, 1
          %s686 = scalar_select %p685, %s37, 1
          %s687 = scalar_lea.vmem %s4, %s686
        $region60: #{tpu_custom_call.1} parent=55 // pred_fallthru
          _
        // Predicated region
        $region61: #{tpu_custom_call.1} parent=55 // pred_check
          %p688 = pneg %p175
        $region62: #{tpu_custom_call.1} parent=55 // pred_check_branch
          %690 = sbr.rel (%p688) target = $region64
        $region63: #{tpu_custom_call.1} parent=55 // pred_region
          %s691 = sand.u32 %s160, 1
          %s692 = scalar_lea.sflag [#allocation5], %s691
          %s693 = sand.u32 %s160, 1
          %s694 = scalar_lea.vmem [#allocation4], %s693
          %695 = dma.done %s692, 16
        $region64: #{tpu_custom_call.1} parent=55 // pred_fallthru
          _
        // Predicated region
        $region65: #{tpu_custom_call.1} parent=55 // pred_check
          %p696 = pneg %p201
        $region66: #{tpu_custom_call.1} parent=55 // pred_check_branch
          %698 = sbr.rel (%p696) target = $region68
        $region67: #{tpu_custom_call.1} parent=55 // pred_region
          %s699 = sand.u32 %s186, 1
          %s700 = scalar_lea.sflag [#allocation7], %s699
          %s701 = sand.u32 %s186, 1
          %s702 = scalar_lea.vmem [#allocation6], %s701
          %703 = dma.done %s700, 16
        $region68: #{tpu_custom_call.1} parent=55 // pred_fallthru
          _
        // Predicated region
        $region69: #{tpu_custom_call.1} parent=55 // pred_check
          %p704 = pneg %p229
        $region70: #{tpu_custom_call.1} parent=55 // pred_check_branch
          %706 = sbr.rel (%p704) target = $region72
        $region71: #{tpu_custom_call.1} parent=55 // pred_region
          %p707 = scmp.lt.s32.totalorder %s37, 1
          %s708 = scalar_select %p707, %s37, 1
          %p709 = scmp.lt.s32.totalorder %s38, 0
          %s710 = scalar_select %p709, %s38, 0
          %s711 = sadd.s32 %s710, %s708
          %s712 = smul.addr %s711, 8
          %s713 = scalar_lea.vmem %s7, %s712
        $region72: #{tpu_custom_call.1} parent=55 // pred_fallthru
          _
      $region56: #{tpu_custom_call.1} parent=5 // pred_fallthru
        _
    $region6: #{tpu_custom_call.1} parent=1 // loop_footer
      %s30 = sadd.s32 1, %s26
    $region7: #{tpu_custom_call.1} parent=1 // loop_footer_branch
      %25 = sbr.rel target = $region3
    $region8: #{tpu_custom_call.1} parent=1 // loop_exit
      _
    %714 = vsyncpa [#allocation5], 1
    %s715 = scalar_lea.sflag [#allocation5], 1
    %716 = vsyncpa %s715, 1
    %717 = vsyncpa [#allocation7], 1
    %s718 = scalar_lea.sflag [#allocation7], 1
    %719 = vsyncpa %s718, 1

</llo_original>
